<compile_context>
chip_gen: v7x
topology: tpu7x:2x2x1
jax: 0.10.0
libtpu: 0.0.40
codegen_flags: <defaults>
</compile_context>

<pallas_src>
import jax
import jax.numpy as jnp
from jax.experimental import pallas as pl
from jax.experimental.pallas import tpu as pltpu

_EPS = 1e-12           # matches torch.nn.functional.normalize default
_EPS_SQ = _EPS * _EPS  # rsqrt(max(ss, eps^2)) == 1 / max(sqrt(ss), eps)


def _round_up(a, b):
    return (a + b - 1) // b * b


def _make_kernel(scale):
    scale = float(scale)

    def kernel(x_ref, w_ref, o_ref, acc_ref, rss_ref, invx_ref, css_ref):
        # x_ref: (tm, tk) raw input tile        w_ref: (tk, tn) raw weight tile
        # o_ref: (tm, tn) output tile
        # acc_ref: (tm, tn) f32 matmul accumulator
        # rss_ref: (tm, 1)  f32 running row sum-of-squares (only for j == 0)
        # invx_ref:(tm, 1)  f32 1/max(||row||, eps), reused across all j
        # css_ref: (1, tn)  f32 running column sum-of-squares of W
        j = pl.program_id(1)
        k = pl.program_id(2)
        nk = pl.num_programs(2)

        @pl.when(k == 0)
        def _():
            acc_ref[...] = jnp.zeros_like(acc_ref)
            css_ref[...] = jnp.zeros_like(css_ref)

        @pl.when(jnp.logical_and(k == 0, j == 0))
        def _():
            rss_ref[...] = jnp.zeros_like(rss_ref)

        x = x_ref[...]
        w = w_ref[...]

        # Raw matmul on the MXU in the input dtype, f32 accumulation.
        acc_ref[...] += jnp.dot(x, w, preferred_element_type=jnp.float32)

        # Column sum-of-squares of the raw weight tile (already in VMEM for the
        # matmul) -> no second HBM pass over W; hidden under the MXU work.
        w32 = w.astype(jnp.float32)
        css_ref[...] += jnp.sum(w32 * w32, axis=0, keepdims=True)

        # Row sum-of-squares only for the first N tile; reused for all j.
        @pl.when(j == 0)
        def _():
            x32 = x.astype(jnp.float32)
            rss_ref[...] += jnp.sum(x32 * x32, axis=-1, keepdims=True)

        @pl.when(k == nk - 1)
        def _():
            @pl.when(j == 0)
            def _():
                # rsqrt -> EUP slot (essentially free next to the VPU work).
                invx_ref[...] = jax.lax.rsqrt(jnp.maximum(rss_ref[...], _EPS_SQ))

            inv_w = scale * jax.lax.rsqrt(jnp.maximum(css_ref[...], _EPS_SQ))
            out = acc_ref[...] * invx_ref[...] * inv_w
            o_ref[...] = out.astype(o_ref.dtype)

    return kernel


def cosine_sim_linear(x, weight, scale=1.0):
    """x: (..., dim_in), weight: (dim_in, dim_out) -> (..., dim_out)."""
    orig_shape = x.shape
    dim_in = orig_shape[-1]
    assert weight.shape[0] == dim_in
    dim_out = weight.shape[1]

    x2d = x.reshape(-1, dim_in)
    m = x2d.shape[0]

    x_sz = jnp.dtype(x2d.dtype).itemsize
    w_sz = jnp.dtype(weight.dtype).itemsize
    o_sz = jnp.dtype(x.dtype).itemsize

    # ---- generation-aware VMEM budget (v5e/v6e: ~100 MiB, v7x: ~50 MiB) ----
    try:
        vmem_cap = int(pltpu.get_tpu_info().vmem_capacity_bytes)
    except Exception:
        vmem_cap = 64 * 1024 * 1024  # conservative (v7x-sized) fallback
    vmem_budget = int(vmem_cap * 0.78)  # leave headroom for compiler scratch

    # ---- tile selection: minimize W re-streaming from HBM ----
    # Single i step whenever M is modest -> W is read from HBM exactly once.
    tm = m if m <= 1024 else 512
    # Full N when small (no ragged tail at all), lane-dense 256 otherwise.
    tn = dim_out if dim_out <= 512 else 256
    tk = dim_in
    grid_k = 1

    def fits(tm_, tn_, tk_):
        io = 2 * (tm_ * tk_ * x_sz + tk_ * tn_ * w_sz + tm_ * tn_ * o_sz)
        scratch = 4 * (tm_ * tn_ + 2 * tm_ * 128 + 8 * tn_)
        return io + scratch <= vmem_budget

    # Shrink tn first, then tm, both toward 128 / MXU-friendly shapes.
    while not fits(tm, tn, tk) and tn > 128:
        tn = max(128, _round_up(tn // 2, 128))
    while not fits(tm, tn, tk) and tm > 128:
        tm = max(128, _round_up(tm // 2, 8))
    # Only if a K-resident tile still cannot fit (huge dim_in on v7x): tile K.
    while not fits(tm, tn, tk) and tk > 1024:
        grid_k *= 2
        tk = _round_up(-(-dim_in // grid_k), 128)

    k_total = grid_k * tk
    if k_total != dim_in:
        # TODO(synk): mask the ragged K tail in-kernel instead of padding; this
        # HBM copy of W only occurs for very large dim_in that forces K tiling.
        x2d = jnp.pad(x2d, ((0, 0), (0, k_total - dim_in)))
        weight = jnp.pad(weight, ((0, k_total - dim_in), (0, 0)))

    grid_m = pl.cdiv(m, tm)
    grid_n = pl.cdiv(dim_out, tn)
    grid = (grid_m, grid_n, grid_k)

    out = pl.pallas_call(
        _make_kernel(scale),
        out_shape=jax.ShapeDtypeStruct((m, dim_out), x.dtype),
        grid_spec=pltpu.PrefetchScalarGridSpec(
            num_scalar_prefetch=0,
            grid=grid,
            in_specs=[
                pl.BlockSpec((tm, tk), lambda i, j, k: (i, k)),
                pl.BlockSpec((tk, tn), lambda i, j, k: (k, j)),
            ],
            out_specs=pl.BlockSpec((tm, tn), lambda i, j, k: (i, j)),
            scratch_shapes=[
                pltpu.VMEM((tm, tn), jnp.float32),  # matmul accumulator
                pltpu.VMEM((tm, 1), jnp.float32),   # running row sum-of-squares
                pltpu.VMEM((tm, 1), jnp.float32),   # inv row norm (reused over j)
                pltpu.VMEM((1, tn), jnp.float32),   # running col sum-of-squares
            ],
        ),
        compiler_params=pltpu.CompilerParams(
            # i parallel (megacore / 2-TC on v7x); j must be arbitrary because
            # inv_x scratch is reused across N tiles; k is the reduction axis.
            dimension_semantics=("parallel", "arbitrary", "arbitrary"),
            vmem_limit_bytes=int(vmem_budget),
        ),
    )(x2d, weight)

    return out.reshape(*orig_shape[:-1], dim_out)


def _reference(x, weight, scale=1.0):
    eps = 1e-12
    xn = x.astype(jnp.float32)
    xn = xn / jnp.maximum(jnp.linalg.norm(xn, axis=-1, keepdims=True), eps)
    w = weight.astype(jnp.float32)
    wn = w / jnp.maximum(jnp.linalg.norm(w, axis=0, keepdims=True), eps)
    return (xn @ wn) * scale


if __name__ == "__main__":
    key = jax.random.PRNGKey(0)
    kx, kw, kx2, kw2, kx3, kw3 = jax.random.split(key, 6)

    # Small shapes consistent with the module: (batch, seq, dim_in) x (dim_in, dim_out)
    batch, seq, dim_in, dim_out = 2, 8, 32, 64
    scale = 0.5
    x = jax.random.normal(kx, (batch, seq, dim_in), dtype=jnp.float32)
    weight = jax.random.normal(kw, (dim_in, dim_out), dtype=jnp.float32)

    out = jax.block_until_ready(cosine_sim_linear(x, weight, scale=scale))
    ref = _reference(x, weight, scale=scale)
    assert out.shape == (batch, seq, dim_out)
    assert jnp.allclose(out, ref, atol=1e-4, rtol=1e-4), "mismatch (f32 case)"

    # Ragged (untiled) shapes: (5, 7, 40) @ (40, 200)
    x2 = jax.random.normal(kx2, (5, 7, 40), dtype=jnp.float32)
    w2 = jax.random.normal(kw2, (40, 200), dtype=jnp.float32)
    out2 = jax.block_until_ready(cosine_sim_linear(x2, w2, scale=1.25))
    ref2 = _reference(x2, w2, scale=1.25)
    assert out2.shape == (5, 7, 200)
    assert jnp.allclose(out2, ref2, atol=1e-4, rtol=1e-4), "mismatch (ragged case)"

    # dim_out > 512 exercises the non-divisible tail N block (no W padding).
    x3 = jax.random.normal(kx3, (3, 16, 96), dtype=jnp.float32)
    w3 = jax.random.normal(kw3, (96, 640), dtype=jnp.float32)
    out3 = jax.block_until_ready(cosine_sim_linear(x3, w3, scale=0.75))
    ref3 = _reference(x3, w3, scale=0.75)
    assert out3.shape == (3, 16, 640)
    assert jnp.allclose(out3, ref3, atol=1e-3, rtol=1e-3), "mismatch (tail-N case)"

    print("KERNEL_OK")
</pallas_src>

<mosaic_0001>
module attributes {stable_mosaic.version = 11 : i64} {
  func.func @kernel(%arg0: i32, %arg1: i32, %arg2: i32, %arg3: memref<16x32xf32, #tpu.memory_space<vmem>>, %arg4: memref<32x64xf32, #tpu.memory_space<vmem>>, %arg5: memref<16x64xf32, #tpu.memory_space<vmem>>, %arg6: memref<16x64xf32, #tpu.memory_space<vmem>>, %arg7: memref<16x1xf32, #tpu.memory_space<vmem>>, %arg8: memref<16x1xf32, #tpu.memory_space<vmem>>, %arg9: memref<1x64xf32, #tpu.memory_space<vmem>>) attributes {dimension_semantics = [#tpu.dimension_semantics<parallel>, #tpu.dimension_semantics<arbitrary>, #tpu.dimension_semantics<arbitrary>], iteration_bounds = array<i64: 1, 1, 1>, scalar_prefetch = 0 : i64, scratch_operands = 4 : i64, tpu.core_type = #tpu.core_type<tc>, window_params = [{transform_indices = @transform_0, window_bounds = array<i64: 16, 32>}, {transform_indices = @transform_1, window_bounds = array<i64: 32, 64>}, {transform_indices = @transform_2, window_bounds = array<i64: 16, 64>}]} {
    %c0_i32 = arith.constant 0 : i32
    %0 = arith.cmpi eq, %arg2, %c0_i32 : i32
    %1 = arith.extui %0 : i1 to i32
    %c0_i32_0 = arith.constant 0 : i32
    %2 = arith.cmpi ne, %1, %c0_i32_0 : i32
    scf.if %2 {
      %cst_20 = arith.constant 0.000000e+00 : f32
      %26 = vector.broadcast %cst_20 : f32 to vector<16x64xf32>
      %c0_21 = arith.constant 0 : index
      %c0_22 = arith.constant 0 : index
      %27 = vector.load %arg6[%c0_21, %c0_22] : memref<16x64xf32, #tpu.memory_space<vmem>>, vector<16x64xf32>
      tpu.vector_store %arg6[%c0_21, %c0_22], %26 {strides = array<i32>} : memref<16x64xf32, #tpu.memory_space<vmem>>, vector<16x64xf32>,
      %cst_23 = arith.constant 0.000000e+00 : f32
      %28 = vector.broadcast %cst_23 : f32 to vector<1x64xf32>
      %c0_24 = arith.constant 0 : index
      %c0_25 = arith.constant 0 : index
      %29 = vector.load %arg9[%c0_24, %c0_25] : memref<1x64xf32, #tpu.memory_space<vmem>>, vector<1x64xf32>
      tpu.vector_store %arg9[%c0_24, %c0_25], %28 {strides = array<i32>} : memref<1x64xf32, #tpu.memory_space<vmem>>, vector<1x64xf32>,
    } else {
    }
    %c0_i32_1 = arith.constant 0 : i32
    %3 = arith.cmpi eq, %arg2, %c0_i32_1 : i32
    %c0_i32_2 = arith.constant 0 : i32
    %4 = arith.cmpi eq, %arg1, %c0_i32_2 : i32
    %5 = arith.andi %3, %4 : i1
    %6 = arith.extui %5 : i1 to i32
    %c0_i32_3 = arith.constant 0 : i32
    %7 = arith.cmpi ne, %6, %c0_i32_3 : i32
    scf.if %7 {
      %cst_20 = arith.constant 0.000000e+00 : f32
      %26 = vector.broadcast %cst_20 : f32 to vector<16x1xf32>
      %c0_21 = arith.constant 0 : index
      %c0_22 = arith.constant 0 : index
      %27 = vector.load %arg7[%c0_21, %c0_22] : memref<16x1xf32, #tpu.memory_space<vmem>>, vector<16x1xf32>
      tpu.vector_store %arg7[%c0_21, %c0_22], %26 {strides = array<i32>} : memref<16x1xf32, #tpu.memory_space<vmem>>, vector<16x1xf32>,
    } else {
    }
    %c0 = arith.constant 0 : index
    %c0_4 = arith.constant 0 : index
    %8 = vector.load %arg3[%c0, %c0_4] : memref<16x32xf32, #tpu.memory_space<vmem>>, vector<16x32xf32>
    %c0_5 = arith.constant 0 : index
    %c0_6 = arith.constant 0 : index
    %9 = vector.load %arg4[%c0_5, %c0_6] : memref<32x64xf32, #tpu.memory_space<vmem>>, vector<32x64xf32>
    %c0_7 = arith.constant 0 : index
    %c0_8 = arith.constant 0 : index
    %10 = vector.load %arg6[%c0_7, %c0_8] : memref<16x64xf32, #tpu.memory_space<vmem>>, vector<16x64xf32>
    %cst = arith.constant dense<0.000000e+00> : vector<16x64xf32>
    %11 = tpu.matmul %8, %9, %cst {dimension_numbers = #tpu.dot_dimension_numbers<[1], [0], [0], [1], [0, 0, 1, 1], [], []>} : vector<16x32xf32>, vector<32x64xf32>, vector<16x64xf32> -> vector<16x64xf32>
    %12 = arith.addf %10, %11 : vector<16x64xf32>
    %c0_9 = arith.constant 0 : index
    %c0_10 = arith.constant 0 : index
    %13 = vector.load %arg6[%c0_9, %c0_10] : memref<16x64xf32, #tpu.memory_space<vmem>>, vector<16x64xf32>
    tpu.vector_store %arg6[%c0_9, %c0_10], %12 {strides = array<i32>} : memref<16x64xf32, #tpu.memory_space<vmem>>, vector<16x64xf32>,
    %c0_11 = arith.constant 0 : index
    %c0_12 = arith.constant 0 : index
    %14 = vector.load %arg9[%c0_11, %c0_12] : memref<1x64xf32, #tpu.memory_space<vmem>>, vector<1x64xf32>
    %15 = arith.mulf %9, %9 : vector<32x64xf32>
    %cst_13 = arith.constant dense<0.000000e+00> : vector<64xf32>
    %16 = vector.multi_reduction <add>, %15, %cst_13 [0] : vector<32x64xf32> to vector<64xf32>
    %17 = vector.shape_cast %16 : vector<64xf32> to vector<1x64xf32>
    %18 = arith.addf %14, %17 : vector<1x64xf32>
    %c0_14 = arith.constant 0 : index
    %c0_15 = arith.constant 0 : index
    %19 = vector.load %arg9[%c0_14, %c0_15] : memref<1x64xf32, #tpu.memory_space<vmem>>, vector<1x64xf32>
    tpu.vector_store %arg9[%c0_14, %c0_15], %18 {strides = array<i32>} : memref<1x64xf32, #tpu.memory_space<vmem>>, vector<1x64xf32>,
    %c0_i32_16 = arith.constant 0 : i32
    %20 = arith.cmpi eq, %arg1, %c0_i32_16 : i32
    %21 = arith.extui %20 : i1 to i32
    %c0_i32_17 = arith.constant 0 : i32
    %22 = arith.cmpi ne, %21, %c0_i32_17 : i32
    scf.if %22 {
      %c0_20 = arith.constant 0 : index
      %c0_21 = arith.constant 0 : index
      %26 = vector.load %arg7[%c0_20, %c0_21] : memref<16x1xf32, #tpu.memory_space<vmem>>, vector<16x1xf32>
      %27 = arith.mulf %8, %8 : vector<16x32xf32>
      %cst_22 = arith.constant dense<0.000000e+00> : vector<16xf32>
      %28 = vector.multi_reduction <add>, %27, %cst_22 [1] : vector<16x32xf32> to vector<16xf32>
      %29 = vector.shape_cast %28 : vector<16xf32> to vector<16x1xf32>
      %30 = arith.addf %26, %29 : vector<16x1xf32>
      %c0_23 = arith.constant 0 : index
      %c0_24 = arith.constant 0 : index
      %31 = vector.load %arg7[%c0_23, %c0_24] : memref<16x1xf32, #tpu.memory_space<vmem>>, vector<16x1xf32>
      tpu.vector_store %arg7[%c0_23, %c0_24], %30 {strides = array<i32>} : memref<16x1xf32, #tpu.memory_space<vmem>>, vector<16x1xf32>,
    } else {
    }
    %c0_i32_18 = arith.constant 0 : i32
    %23 = arith.cmpi eq, %arg2, %c0_i32_18 : i32
    %24 = arith.extui %23 : i1 to i32
    %c0_i32_19 = arith.constant 0 : i32
    %25 = arith.cmpi ne, %24, %c0_i32_19 : i32
    scf.if %25 {
      %c0_i32_20 = arith.constant 0 : i32
      %26 = arith.cmpi eq, %arg1, %c0_i32_20 : i32
      %27 = arith.extui %26 : i1 to i32
      %c0_i32_21 = arith.constant 0 : i32
      %28 = arith.cmpi ne, %27, %c0_i32_21 : i32
      scf.if %28 {
        %c0_32 = arith.constant 0 : index
        %c0_33 = arith.constant 0 : index
        %42 = vector.load %arg7[%c0_32, %c0_33] : memref<16x1xf32, #tpu.memory_space<vmem>>, vector<16x1xf32>
        %cst_34 = arith.constant 1.000000e-24 : f32
        %43 = vector.broadcast %cst_34 : f32 to vector<16x1xf32>
        %44 = arith.maximumf %42, %43 : vector<16x1xf32>
        %45 = math.rsqrt %44 : vector<16x1xf32>
        %c0_35 = arith.constant 0 : index
        %c0_36 = arith.constant 0 : index
        %46 = vector.load %arg8[%c0_35, %c0_36] : memref<16x1xf32, #tpu.memory_space<vmem>>, vector<16x1xf32>
        tpu.vector_store %arg8[%c0_35, %c0_36], %45 {strides = array<i32>} : memref<16x1xf32, #tpu.memory_space<vmem>>, vector<16x1xf32>,
      } else {
      }
      %c0_22 = arith.constant 0 : index
      %c0_23 = arith.constant 0 : index
      %29 = vector.load %arg9[%c0_22, %c0_23] : memref<1x64xf32, #tpu.memory_space<vmem>>, vector<1x64xf32>
      %cst_24 = arith.constant 1.000000e-24 : f32
      %30 = vector.broadcast %cst_24 : f32 to vector<1x64xf32>
      %31 = arith.maximumf %29, %30 : vector<1x64xf32>
      %32 = math.rsqrt %31 : vector<1x64xf32>
      %cst_25 = arith.constant 5.000000e-01 : f32
      %33 = vector.broadcast %cst_25 : f32 to vector<1x64xf32>
      %34 = arith.mulf %33, %32 : vector<1x64xf32>
      %c0_26 = arith.constant 0 : index
      %c0_27 = arith.constant 0 : index
      %35 = vector.load %arg6[%c0_26, %c0_27] : memref<16x64xf32, #tpu.memory_space<vmem>>, vector<16x64xf32>
      %c0_28 = arith.constant 0 : index
      %c0_29 = arith.constant 0 : index
      %36 = vector.load %arg8[%c0_28, %c0_29] : memref<16x1xf32, #tpu.memory_space<vmem>>, vector<16x1xf32>
      %37 = vector.broadcast %36 : vector<16x1xf32> to vector<16x64xf32>
      %38 = arith.mulf %35, %37 : vector<16x64xf32>
      %39 = vector.broadcast %34 : vector<1x64xf32> to vector<16x64xf32>
      %40 = arith.mulf %38, %39 : vector<16x64xf32>
      %c0_30 = arith.constant 0 : index
      %c0_31 = arith.constant 0 : index
      %41 = vector.load %arg5[%c0_30, %c0_31] : memref<16x64xf32, #tpu.memory_space<vmem>>, vector<16x64xf32>
      tpu.vector_store %arg5[%c0_30, %c0_31], %40 {strides = array<i32>} : memref<16x64xf32, #tpu.memory_space<vmem>>, vector<16x64xf32>,
    } else {
    }
    return
  }
  func.func @transform_0(%arg0: i32, %arg1: i32, %arg2: i32) -> (i32, i32) {
    %c0_i32 = arith.constant 0 : i32
    return %arg0, %arg2 : i32, i32
  }
  func.func @transform_1(%arg0: i32, %arg1: i32, %arg2: i32) -> (i32, i32) {
    %c0_i32 = arith.constant 0 : i32
    return %arg2, %arg1 : i32, i32
  }
  func.func @transform_2(%arg0: i32, %arg1: i32, %arg2: i32) -> (i32, i32) {
    %c0_i32 = arith.constant 0 : i32
    return %arg0, %arg1 : i32, i32
  }
}

</mosaic_0001>

<llo_original>
// kernel: tpu_custom_call.1
$region0: #{tpu_custom_call.1}
  #allocation0 [shape = 'u32[]', space=smem, size = 0x4, offset = 0x4, fixed_abs, tag = 'smem constant byte address 0x4 - core index']
  #allocation1 [shape = 'u32[144,128]{1,0:T(1,128)}', space=vmem, size = 0x12000, scoped, tag = 'internal scratch']
  #allocation2 [shape = 'f32[16,64]{1,0:T(8,128)}', space=vmem, size = 0x2000, scoped, tag = 'scratch operand']
  #allocation3 [shape = 'f32[16,1]{1,0:T(8,128)}', space=vmem, size = 0x2000, scoped, tag = 'scratch operand']
  #allocation4 [shape = 'f32[16,1]{1,0:T(8,128)}', space=vmem, size = 0x2000, scoped, tag = 'scratch operand']
  #allocation5 [shape = 'f32[1,64]{1,0:T(1,128)}', space=vmem, size = 0x200, scoped, tag = 'scratch operand']
  %s0 = inlined_call_operand.hbm [shape: f32[16,32], index: 0, kind: input, shape index: {}]
  %s1 = inlined_call_operand.hbm [shape: f32[32,64], index: 1, kind: input, shape index: {}]
  %s2 = inlined_call_operand.hbm [shape: f32[16,64], index: 2, kind: output, shape index: {}]
  %s3 = sld [smem:[#allocation0]]
  $region46: #{tpu_custom_call.1} parent=0
    _
  %s5 = ssub.s32 1, %s3
  %s6 = scalar_select 0, %s5, %s3
  $region1: #{tpu_custom_call.1} parent=0
    #allocation6 [shape = 'u8[8192]{0}', space=vmem, size = 0x2000, scoped, tag = 'input window, operand 0, single buffered']
    #allocation7 [shape = 's32[1]{0}', space=sflag, size = 0x4, scoped, tag = 'scoped memory for tpu_custom_call.1']
    #allocation8 [shape = 's32[1]{0}', space=sflag, size = 0x4, scoped, tag = 'scoped memory for tpu_custom_call.1']
    #allocation9 [shape = 'u8[16384]{0}', space=vmem, size = 0x4000, scoped, tag = 'input window, operand 1, single buffered']
    #allocation10 [shape = 's32[1]{0}', space=sflag, size = 0x4, scoped, tag = 'scoped memory for tpu_custom_call.1']
    #allocation11 [shape = 'u8[8192]{0}', space=vmem, size = 0x2000, scoped, tag = 'output window, operand 0, single buffered']
    %7 = vsyncpa [#allocation7], 0
    %8 = vsyncpa [#allocation10], 0
    %9 = vsyncpa [#allocation8], 0
    // Predicated region
    $region2: #{tpu_custom_call.1} parent=1 // pred_check
      _
    $region3: #{tpu_custom_call.1} parent=1 // pred_check_branch
      %11 = sbr.rel (0) target = $region5
    $region4: #{tpu_custom_call.1} parent=1 // pred_region
      %s13 = ssub.s32 256, 256
      %14 = vsyncadd [#allocation7], %s13
      %s15 = sshll.u32 [#allocation6], 4
      %s16 = int_to_ptr.vmem [resolvable:$true] %s15
      %21 = dma.hbm_to_vmem [thread:$0]  %s0, 256, %s16, [#allocation7], 128, 128, 8
    $region5: #{tpu_custom_call.1} parent=1 // pred_fallthru
      _
    // Predicated region
    $region6: #{tpu_custom_call.1} parent=1 // pred_check
      _
    $region7: #{tpu_custom_call.1} parent=1 // pred_check_branch
      %23 = sbr.rel (0) target = $region9
    $region8: #{tpu_custom_call.1} parent=1 // pred_region
      %s25 = ssub.s32 512, 512
      %26 = vsyncadd [#allocation10], %s25
      %s27 = sshll.u32 [#allocation9], 4
      %s28 = int_to_ptr.vmem [resolvable:$true] %s27
      %33 = dma.hbm_to_vmem [thread:$0]  %s1, 512, %s28, [#allocation10], 128, 128, 8
    $region9: #{tpu_custom_call.1} parent=1 // pred_fallthru
      _
    // Predicated region
    $region10: #{tpu_custom_call.1} parent=1 // pred_check
      _
    $region11: #{tpu_custom_call.1} parent=1 // pred_check_branch
      %35 = sbr.rel (0) target = $region13
    $region12: #{tpu_custom_call.1} parent=1 // pred_region
      %36 = dma.done [#allocation7], 256
    $region13: #{tpu_custom_call.1} parent=1 // pred_fallthru
      _
    // Predicated region
    $region14: #{tpu_custom_call.1} parent=1 // pred_check
      _
    $region15: #{tpu_custom_call.1} parent=1 // pred_check_branch
      %38 = sbr.rel (0) target = $region17
    $region16: #{tpu_custom_call.1} parent=1 // pred_region
      %39 = dma.done [#allocation10], 512
    $region17: #{tpu_custom_call.1} parent=1 // pred_fallthru
      _
    %p40 = scmp.eq.s32.totalorder 0, 0
    // Predicated region
    $region18: #{tpu_custom_call.1} parent=1 // pred_check
      %p41 = pneg %p40
    $region19: #{tpu_custom_call.1} parent=1 // pred_check_branch
      %43 = sbr.rel (%p41) target = $region21
    $region20: #{tpu_custom_call.1} parent=1 // pred_region
      %vm44 = vcmask 523264
      %45 = vst.msk [vmem:[#allocation2] sm:$0xff] %vm44, 0.0
      %46 = vst.msk [vmem:[#allocation2 + $0x8] sm:$0xff] %vm44, 0.0
      %vm47 = vcmask 516096
      %48 = vst.msk [vmem:[#allocation5] sm:$0x1] %vm47, 0.0
    $region21: #{tpu_custom_call.1} parent=1 // pred_fallthru
      _
    %p49 = scmp.eq.s32.totalorder 0, 0
    %p50 = pnand %p40, %p49
    %p51 = pneg %p50
    // Predicated region
    $region22: #{tpu_custom_call.1} parent=1 // pred_check
      _
    $region23: #{tpu_custom_call.1} parent=1 // pred_check_branch
      %53 = sbr.rel (%p50) target = $region25
    $region24: #{tpu_custom_call.1} parent=1 // pred_region
      %vm54 = vcmask 7168
      %55 = vst.msk [vmem:[#allocation3] sm:$0xff] %vm54, 0.0
      %56 = vst.msk [vmem:[#allocation3 + $0x8] sm:$0xff] %vm54, 0.0
    $region25: #{tpu_custom_call.1} parent=1 // pred_fallthru
      _
    %v57 = vld [vmem:[#allocation6] sm:$0xff]
    %v58 = vld [vmem:[#allocation6 + $0x8] sm:$0xff]
    %v59 = vld [vmem:[#allocation9] sm:$0xff]
    %v60 = vld [vmem:[#allocation9 + $0x8] sm:$0xff]
    %v61 = vld [vmem:[#allocation9 + $0x10] sm:$0xff]
    %v62 = vld [vmem:[#allocation9 + $0x18] sm:$0xff]
    %v63 = vld [vmem:[#allocation2] sm:$0xff]
    %v64 = vld [vmem:[#allocation2 + $0x8] sm:$0xff]
    %vm65 = vcmask 261120
    %v67 = vsel %vm65, %v57, 0
    %v70 = vsel %vm65, %v58, 0
    %72 = vmatprep.subr.mxu0 0.0
    %73 = vmatpush1.msra.mxu0 %v59
    %74 = vmatprep.subr.mxu0 0.0
    %75 = vmatpush1.msra.mxu0 %v60
    %76 = vmatprep.subr.mxu0 0.0
    %77 = vmatpush1.msra.mxu0 %v61
    %78 = vmatprep.subr.mxu0 0.0
    %79 = vmatpush1.msra.mxu0 %v62
    %80 = vmatprep.subr.mxu0 0.0
    %81 = vmatpush1.msra.mxu0 0.0
    %82 = vmatprep.subr.mxu0 0.0
    %83 = vmatpush1.msra.mxu0 0.0
    %84 = vmatprep.subr.mxu0 0.0
    %85 = vmatpush1.msra.mxu0 0.0
    %86 = vmatprep.subr.mxu0 0.0
    %87 = vmatpush1.msra.mxu0 0.0
    %88 = vmatprep.subr.mxu0 0.0
    %89 = vmatpush1.msra.mxu0 0.0
    %90 = vmatprep.subr.mxu0 0.0
    %91 = vmatpush1.msra.mxu0 0.0
    %92 = vmatprep.subr.mxu0 0.0
    %93 = vmatpush1.msra.mxu0 0.0
    %94 = vmatprep.subr.mxu0 0.0
    %95 = vmatpush1.msra.mxu0 0.0
    %96 = vmatprep.subr.mxu0 0.0
    %97 = vmatpush1.msra.mxu0 0.0
    %98 = vmatprep.subr.mxu0 0.0
    %99 = vmatpush1.msra.mxu0 0.0
    %100 = vmatprep.subr.mxu0 0.0
    %101 = vmatpush1.msra.mxu0 0.0
    %102 = vmatprep.subr.mxu0 0.0
    %103 = vmatpush1.msra.mxu0 0.0
    %104 = vmatprep.subr.mxu0 0.0
    %105 = vmatpush1.msra.mxu0 0.0
    %106 = vmatprep.subr.mxu0 0.0
    %107 = vmatpush1.msra.mxu0 0.0
    %108 = vmatprep.subr.mxu0 0.0
    %109 = vmatpush1.msra.mxu0 0.0
    %110 = vmatprep.subr.mxu0 0.0
    %111 = vmatpush1.msra.mxu0 0.0
    %112 = vmatprep.subr.mxu0 0.0
    %113 = vmatpush1.msra.mxu0 0.0
    %114 = vmatprep.subr.mxu0 0.0
    %115 = vmatpush1.msra.mxu0 0.0
    %116 = vmatprep.subr.mxu0 0.0
    %117 = vmatpush1.msra.mxu0 0.0
    %118 = vmatprep.subr.mxu0 0.0
    %119 = vmatpush1.msra.mxu0 0.0
    %120 = vmatprep.subr.mxu0 0.0
    %121 = vmatpush1.msra.mxu0 0.0
    %122 = vmatprep.subr.mxu0 0.0
    %123 = vmatpush1.msra.mxu0 0.0
    %124 = vmatprep.subr.mxu0 0.0
    %125 = vmatpush1.msra.mxu0 0.0
    %126 = vmatprep.subr.mxu0 0.0
    %127 = vmatpush1.msra.mxu0 0.0
    %128 = vmatprep.subr.mxu0 0.0
    %129 = vmatpush1.msra.mxu0 0.0
    %130 = vmatprep.subr.mxu0 0.0
    %131 = vmatpush1.msra.mxu0 0.0
    %132 = vmatprep.subr.mxu0 0.0
    %133 = vmatpush1.msra.mxu0 0.0
    %134 = vmatprep.subr.mxu0 0.0
    %135 = vmatpush1.msra.mxu0 0.0
    %136 = vmatprep.mubr.f32.mxu0 0.0
    %137 = vmatmul.mubr.f32.gmra.mrb[0].mxu0 %v67
    %v138 = vpop.f32.mrb[0].mxu0
    %v139 = vadd.f32 0.0, %v138
    %v140 = vpop.f32.mrb[0].mxu0
    %141 = vmatprep.mubr.f32.mxu0 0.0
    %142 = vmatmul.mubr.f32.gmra.mrb[0].mxu0 %v70
    %v143 = vpop.f32.mrb[0].mxu0
    %v144 = vadd.f32 0.0, %v143
    %v145 = vpop.f32.mrb[0].mxu0
    %146 = vdwg.mxu0
    %v147 = vadd.f32 %v63, %v139
    %v148 = vadd.f32 %v64, %v144
    %vm149 = vcmask 523264
    %150 = vst.msk [vmem:[#allocation2] sm:$0xff] %vm149, %v147
    %151 = vst.msk [vmem:[#allocation2 + $0x8] sm:$0xff] %vm149, %v148
    %v152 = vld [vmem:[#allocation5] sm:$0x1]
    %v153 = vmul.f32 %v59, %v59
    %v154 = vmul.f32 %v60, %v60
    %v155 = vmul.f32 %v61, %v61
    %v156 = vmul.f32 %v62, %v62
    %v157 = vsel %vm149, %v153, 0.0
    %v158 = vsel %vm149, %v154, 0.0
    %v159 = vadd.f32 %v157, %v158
    %v160 = vsel %vm149, %v155, 0.0
    %v161 = vadd.f32 %v159, %v160
    %v162 = vsel %vm149, %v156, 0.0
    %v163 = vadd.f32 %v161, %v162
    %v164 = vrot.slane %v163, 4
    %v165 = vadd.f32 %v163, %v164
    %v166 = vrot.slane %v165, 2
    %v167 = vadd.f32 %v165, %v166
    %v168 = vrot.slane %v167, 1
    %v169 = vadd.f32 %v167, %v168
    %v170 = vadd.f32 %v152, %v169
    %vm171 = vcmask 516096
    %172 = vst.msk [vmem:[#allocation5] sm:$0x1] %vm171, %v170
    // Predicated region
    $region26: #{tpu_custom_call.1} parent=1 // pred_check
      %p173 = pneg %p49
    $region27: #{tpu_custom_call.1} parent=1 // pred_check_branch
      %175 = sbr.rel (%p173) target = $region29
    $region28: #{tpu_custom_call.1} parent=1 // pred_region
      %v176 = vld [vmem:[#allocation3] sm:$0xff]
      %v177 = vld [vmem:[#allocation3 + $0x8] sm:$0xff]
      %v178 = vmul.f32 %v57, %v57
      %v179 = vmul.f32 %v58, %v58
      %v180 = vsel %vm65, %v178, 0.0
      %181 = vadd.xlane.f32.xlu0 %v180
      %v182 = vpop.xlane.xlu0 %181
      %v183 = vsel %vm65, %v179, 0.0
      %184 = vadd.xlane.f32.xlu0 %v183
      %v185 = vpop.xlane.xlu0 %184
      %v186 = vadd.f32 %v176, %v182
      %v187 = vadd.f32 %v177, %v185
      %vm188 = vcmask 7168
      %189 = vst.msk [vmem:[#allocation3] sm:$0xff] %vm188, %v186
      %190 = vst.msk [vmem:[#allocation3 + $0x8] sm:$0xff] %vm188, %v187
    $region29: #{tpu_custom_call.1} parent=1 // pred_fallthru
      _
    // Predicated region
    $region30: #{tpu_custom_call.1} parent=1 // pred_check
      %p191 = pneg %p40
    $region31: #{tpu_custom_call.1} parent=1 // pred_check_branch
      %193 = sbr.rel (%p191) target = $region33
    $region32: #{tpu_custom_call.1} parent=1 // pred_region
      // Predicated region
      $region34: #{tpu_custom_call.1} parent=32 // pred_check
        %p194 = pneg %p49
      $region35: #{tpu_custom_call.1} parent=32 // pred_check_branch
        %196 = sbr.rel (%p194) target = $region37
      $region36: #{tpu_custom_call.1} parent=32 // pred_region
        %v197 = vld [vmem:[#allocation3] sm:$0xff]
        %v198 = vld [vmem:[#allocation3 + $0x8] sm:$0xff]
        %v199 = vmax.f32 %v197, 1e-24
        %v200 = vmax.f32 %v198, 1e-24
        %v201 = vrsqrt.pop %v199
        %v202 = vrsqrt.pop %v200
        %vm203 = vcmask 7168
        %204 = vst.msk [vmem:[#allocation4] sm:$0xff] %vm203, %v201
        %205 = vst.msk [vmem:[#allocation4 + $0x8] sm:$0xff] %vm203, %v202
      $region37: #{tpu_custom_call.1} parent=32 // pred_fallthru
        _
      %v206 = vld [vmem:[#allocation5] sm:$0x1]
      %v207 = vmax.f32 %v206, 1e-24
      %v208 = vrsqrt.pop %v207
      %v209 = vmul.f32 %v208, 0.5
      %v210 = vld [vmem:[#allocation2] sm:$0xff]
      %v211 = vld [vmem:[#allocation2 + $0x8] sm:$0xff]
      %v212 = vld [vmem:[#allocation4] sm:$0xff]
      %v213 = vld [vmem:[#allocation4 + $0x8] sm:$0xff]
      %215 = vset.pattern.permute.xlu0 0
      %216 = vperm.xlu0 %215, %v212
      %v217 = vpop.permute.xlu0 %216
      %220 = vset.pattern.permute.xlu0 0
      %221 = vperm.xlu0 %220, %v213
      %v222 = vpop.permute.xlu0 %221
      %v224 = vmul.f32 %v210, %v217
      %v225 = vmul.f32 %v211, %v222
      %v227 = vlaneseq
      %v228 = vshrl.u32 %v227, 7
      %v229 = vsub.s32 0, %v228
      %v230 = vrot.slane %v209, %v229
      %v232 = vmul.f32 %v224, %v230
      %v233 = vmul.f32 %v225, %v230
      %234 = vst.msk [vmem:[#allocation11] sm:$0xff] %vm149, %v232
      %235 = vst.msk [vmem:[#allocation11 + $0x8] sm:$0xff] %vm149, %v233
    $region33: #{tpu_custom_call.1} parent=1 // pred_fallthru
      _
    // Predicated region
    $region38: #{tpu_custom_call.1} parent=1 // pred_check
      _
    $region39: #{tpu_custom_call.1} parent=1 // pred_check_branch
      %237 = sbr.rel (0) target = $region41
    $region40: #{tpu_custom_call.1} parent=1 // pred_region
      %s239 = ssub.s32 256, 256
      %240 = vsyncadd [#allocation8], %s239
      %s241 = sshll.u32 [#allocation11], 4
      %s242 = int_to_ptr.vmem [resolvable:$true] %s241
      %247 = dma.vmem_to_hbm [thread:$0]  %s242, 256, %s2, [#allocation8], 128, 128, 8
    $region41: #{tpu_custom_call.1} parent=1 // pred_fallthru
      _
    // Predicated region
    $region42: #{tpu_custom_call.1} parent=1 // pred_check
      _
    $region43: #{tpu_custom_call.1} parent=1 // pred_check_branch
      %249 = sbr.rel (0) target = $region45
    $region44: #{tpu_custom_call.1} parent=1 // pred_region
      %250 = dma.done [#allocation8], 256
    $region45: #{tpu_custom_call.1} parent=1 // pred_fallthru
      _
    %251 = vsyncpa [#allocation7], 1
    %252 = vsyncpa [#allocation10], 1
    %253 = vsyncpa [#allocation8], 1

</llo_original>
